<compile_context>
chip_gen: v5e
topology: v5e:2x2
jax: 0.10.0
libtpu: 0.0.40
codegen_flags: <defaults>
</compile_context>

<pallas_src>
import jax
import jax.numpy as jnp
from jax.experimental import pallas as pl
from jax.experimental.pallas import tpu as pltpu


SUBLANE = 8  # f32 sublane count (batch tiles must be a multiple of this)


def _round_up(n, m):
    return ((n + m - 1) // m) * m


def digitnn_kernel(x_ref, w1_ref, b1_ref, w2_ref, b2_ref, out_ref):
    # Cast activations to the weight dtype (bf16) in-kernel, hidden under DMA.
    x = x_ref[...].astype(w1_ref.dtype)
    # layer1: (TB, D) @ (D, H) -> f32 accumulate on the MXU (K=64 is fine).
    h = jnp.dot(x, w1_ref[...], preferred_element_type=jnp.float32)
    # bias + ReLU in f32.
    h = jnp.maximum(h + b1_ref[...], 0.0)
    # layer2: (TB, H) @ (H, O) -> f32 accumulate.
    y = jnp.dot(h.astype(w2_ref.dtype), w2_ref[...],
                preferred_element_type=jnp.float32)
    # Single (TB, O) store per grid step — O stays un-padded (masked vst is
    # cheap; this kernel has plenty of store-slot slack).
    out_ref[...] = (y + b2_ref[...]).astype(out_ref.dtype)


def digitnn_forward(x, w1, b1, w2, b2, *, tile_batch=4096):
    """Fused forward of DigitNN.

    x : (B, D) f32
    w1: (D, H) f32   (transpose of PyTorch's layer1.weight)
    b1: (H,)   f32
    w2: (H, O) f32   (transpose of PyTorch's layer2.weight)
    b2: (O,)   f32
    returns (B, O) f32
    """
    B, D = x.shape
    H = w1.shape[1]
    O = w2.shape[1]

    # --- batch tiling -----------------------------------------------------
    # Number of grid steps; force >= 2 when the batch is big enough so the
    # "parallel" batch axis can be sharded across both TensorCores on v7x.
    n_steps = pl.cdiv(B, tile_batch)
    if n_steps < 2 and B >= 2 * SUBLANE:
        n_steps = 2
    # Pick the tile to minimize dead padding rows, sublane-aligned.
    TB = _round_up(pl.cdiv(B, n_steps), SUBLANE)
    Bp = n_steps * TB

    # Only batch rows are ever padded (and only when B isn't tile-aligned).
    x_p = x if Bp == B else jnp.pad(x, ((0, Bp - B), (0, 0)))

    # Weights are tiny and reused every step: cast to bf16 once in the
    # wrapper. Biases stay f32 for the f32 epilogue.
    w1_p = w1.astype(jnp.bfloat16)
    w2_p = w2.astype(jnp.bfloat16)
    b1_p = b1.reshape(1, H).astype(jnp.float32)
    b2_p = b2.reshape(1, O).astype(jnp.float32)

    out = pl.pallas_call(
        digitnn_kernel,
        out_shape=jax.ShapeDtypeStruct((Bp, O), jnp.float32),
        grid_spec=pl.GridSpec(
            grid=(n_steps,),
            in_specs=[
                # batch-tiled activation: new block each grid step
                # (last block dim == full array dim D, so no lane padding)
                pl.BlockSpec((TB, D), lambda i: (i, 0)),
                # weights / biases: constant block index -> VMEM-resident
                pl.BlockSpec((D, H), lambda i: (0, 0)),
                pl.BlockSpec((1, H), lambda i: (0, 0)),
                pl.BlockSpec((H, O), lambda i: (0, 0)),
                pl.BlockSpec((1, O), lambda i: (0, 0)),
            ],
            # output block last dim == full array dim O: no padded writeback
            out_specs=pl.BlockSpec((TB, O), lambda i: (i, 0)),
        ),
        compiler_params=pltpu.CompilerParams(
            dimension_semantics=("parallel",),
        ),
    )(x_p, w1_p, b1_p, w2_p, b2_p)

    # Strip only the batch padding (if any); no lane slicing needed anymore.
    return out if Bp == B else out[:B]


def init_params(key, input_dim, num_hidden, output_dim):
    """Deterministic init mimicking nn.Linear's U(-1/sqrt(fan_in), 1/sqrt(fan_in)).

    PyTorch stores weights as (out, in); we store the transpose (in, out).
    """
    k1, k2, k3, k4 = jax.random.split(key, 4)
    lim1 = 1.0 / (input_dim ** 0.5)
    lim2 = 1.0 / (num_hidden ** 0.5)
    w1 = jax.random.uniform(k1, (input_dim, num_hidden), jnp.float32, -lim1, lim1)
    b1 = jax.random.uniform(k2, (num_hidden,), jnp.float32, -lim1, lim1)
    w2 = jax.random.uniform(k3, (num_hidden, output_dim), jnp.float32, -lim2, lim2)
    b2 = jax.random.uniform(k4, (output_dim,), jnp.float32, -lim2, lim2)
    return w1, b1, w2, b2


if __name__ == "__main__":
    # Small shapes consistent with DigitNN(input_dim, num_hidden, output_dim)
    batch, input_dim, num_hidden, output_dim = 8, 64, 32, 10

    key = jax.random.PRNGKey(0)
    kx, kp = jax.random.split(key)
    x = jax.random.normal(kx, (batch, input_dim), jnp.float32)
    w1, b1, w2, b2 = init_params(kp, input_dim, num_hidden, output_dim)

    out = digitnn_forward(x, w1, b1, w2, b2)
    out = jax.block_until_ready(out)

    # Reference check in plain JAX (f32 math; kernel uses bf16 matmul inputs
    # with f32 accumulation, so use a correspondingly loose tolerance).
    ref = jnp.maximum(x @ w1 + b1, 0.0) @ w2 + b2
    assert out.shape == (batch, output_dim)
    assert jnp.allclose(out, ref, atol=3e-2, rtol=3e-2), (
        float(jnp.max(jnp.abs(out - ref))))

    print("KERNEL_OK")
</pallas_src>

<mosaic_0001>
module attributes {stable_mosaic.version = 11 : i64} {
  func.func @digitnn_kernel(%arg0: i32, %arg1: memref<8x64xf32, #tpu.memory_space<vmem>>, %arg2: memref<64x32xbf16, #tpu.memory_space<vmem>>, %arg3: memref<1x32xf32, #tpu.memory_space<vmem>>, %arg4: memref<32x10xbf16, #tpu.memory_space<vmem>>, %arg5: memref<1x10xf32, #tpu.memory_space<vmem>>, %arg6: memref<8x10xf32, #tpu.memory_space<vmem>>) attributes {dimension_semantics = [#tpu.dimension_semantics<parallel>], iteration_bounds = array<i64: 1>, scalar_prefetch = 0 : i64, scratch_operands = 0 : i64, tpu.core_type = #tpu.core_type<tc>, window_params = [{transform_indices = @transform_0, window_bounds = array<i64: 8, 64>}, {pipeline_mode = #tpu.pipeline_mode<synchronous>, transform_indices = @transform_1, window_bounds = array<i64: 64, 32>}, {pipeline_mode = #tpu.pipeline_mode<synchronous>, transform_indices = @transform_2, window_bounds = array<i64: 1, 32>}, {pipeline_mode = #tpu.pipeline_mode<synchronous>, transform_indices = @transform_3, window_bounds = array<i64: 32, 10>}, {pipeline_mode = #tpu.pipeline_mode<synchronous>, transform_indices = @transform_4, window_bounds = array<i64: 1, 10>}, {transform_indices = @transform_5, window_bounds = array<i64: 8, 10>}]} {
    %c0 = arith.constant 0 : index
    %c0_0 = arith.constant 0 : index
    %0 = vector.load %arg1[%c0, %c0_0] : memref<8x64xf32, #tpu.memory_space<vmem>>, vector<8x64xf32>
    %1 = arith.truncf %0 : vector<8x64xf32> to vector<8x64xbf16>
    %c0_1 = arith.constant 0 : index
    %c0_2 = arith.constant 0 : index
    %2 = vector.load %arg2[%c0_1, %c0_2] : memref<64x32xbf16, #tpu.memory_space<vmem>>, vector<64x32xbf16>
    %cst = arith.constant dense<0.000000e+00> : vector<8x32xf32>
    %3 = tpu.matmul %1, %2, %cst {dimension_numbers = #tpu.dot_dimension_numbers<[1], [0], [0], [1], [0, 0, 1, 1], [], []>} : vector<8x64xbf16>, vector<64x32xbf16>, vector<8x32xf32> -> vector<8x32xf32>
    %c0_3 = arith.constant 0 : index
    %c0_4 = arith.constant 0 : index
    %4 = vector.load %arg3[%c0_3, %c0_4] : memref<1x32xf32, #tpu.memory_space<vmem>>, vector<1x32xf32>
    %5 = vector.broadcast %4 : vector<1x32xf32> to vector<8x32xf32>
    %6 = arith.addf %3, %5 : vector<8x32xf32>
    %cst_5 = arith.constant 0.000000e+00 : f32
    %7 = vector.broadcast %cst_5 : f32 to vector<8x32xf32>
    %8 = arith.maximumf %6, %7 : vector<8x32xf32>
    %9 = arith.truncf %8 : vector<8x32xf32> to vector<8x32xbf16>
    %c0_6 = arith.constant 0 : index
    %c0_7 = arith.constant 0 : index
    %10 = vector.load %arg4[%c0_6, %c0_7] : memref<32x10xbf16, #tpu.memory_space<vmem>>, vector<32x10xbf16>
    %cst_8 = arith.constant dense<0.000000e+00> : vector<8x10xf32>
    %11 = tpu.matmul %9, %10, %cst_8 {dimension_numbers = #tpu.dot_dimension_numbers<[1], [0], [0], [1], [0, 0, 1, 1], [], []>} : vector<8x32xbf16>, vector<32x10xbf16>, vector<8x10xf32> -> vector<8x10xf32>
    %c0_9 = arith.constant 0 : index
    %c0_10 = arith.constant 0 : index
    %12 = vector.load %arg5[%c0_9, %c0_10] : memref<1x10xf32, #tpu.memory_space<vmem>>, vector<1x10xf32>
    %13 = vector.broadcast %12 : vector<1x10xf32> to vector<8x10xf32>
    %14 = arith.addf %11, %13 : vector<8x10xf32>
    %c0_11 = arith.constant 0 : index
    %c0_12 = arith.constant 0 : index
    %15 = vector.load %arg6[%c0_11, %c0_12] : memref<8x10xf32, #tpu.memory_space<vmem>>, vector<8x10xf32>
    tpu.vector_store %arg6[%c0_11, %c0_12], %14 {strides = array<i32>} : memref<8x10xf32, #tpu.memory_space<vmem>>, vector<8x10xf32>,
    return
  }
  func.func @transform_0(%arg0: i32) -> (i32, i32) {
    %c0_i32 = arith.constant 0 : i32
    %c0_i32_0 = arith.constant 0 : i32
    return %arg0, %c0_i32 : i32, i32
  }
  func.func @transform_1(%arg0: i32) -> (i32, i32) {
    %c0_i32 = arith.constant 0 : i32
    %c0_i32_0 = arith.constant 0 : i32
    %c0_i32_1 = arith.constant 0 : i32
    return %c0_i32, %c0_i32_0 : i32, i32
  }
  func.func @transform_2(%arg0: i32) -> (i32, i32) {
    %c0_i32 = arith.constant 0 : i32
    %c0_i32_0 = arith.constant 0 : i32
    %c0_i32_1 = arith.constant 0 : i32
    return %c0_i32, %c0_i32_0 : i32, i32
  }
  func.func @transform_3(%arg0: i32) -> (i32, i32) {
    %c0_i32 = arith.constant 0 : i32
    %c0_i32_0 = arith.constant 0 : i32
    %c0_i32_1 = arith.constant 0 : i32
    return %c0_i32, %c0_i32_0 : i32, i32
  }
  func.func @transform_4(%arg0: i32) -> (i32, i32) {
    %c0_i32 = arith.constant 0 : i32
    %c0_i32_0 = arith.constant 0 : i32
    %c0_i32_1 = arith.constant 0 : i32
    return %c0_i32, %c0_i32_0 : i32, i32
  }
  func.func @transform_5(%arg0: i32) -> (i32, i32) {
    %c0_i32 = arith.constant 0 : i32
    %c0_i32_0 = arith.constant 0 : i32
    return %arg0, %c0_i32 : i32, i32
  }
}

</mosaic_0001>

<llo_original>
// kernel: tpu_custom_call.1
$region0: #{tpu_custom_call.1}
  #allocation0 [shape = 'u32[]', space=smem, size = 0x4, offset = 0x4, fixed_abs, tag = 'smem constant byte address 0x4 - core index']
  #allocation1 [shape = 'u32[72,128]{1,0:T(1,128)}', space=vmem, size = 0x9000, scoped, tag = 'internal scratch']
  %s0 = inlined_call_operand.vmem [shape: f32[8,64], index: 0, kind: input, shape index: {}]
  %s1 = inlined_call_operand.vmem [shape: bf16[64,32], index: 1, kind: input, shape index: {}]
  %s2 = inlined_call_operand.vmem [shape: f32[1,32], index: 2, kind: input, shape index: {}]
  %s3 = inlined_call_operand.vmem [shape: bf16[32,10], index: 3, kind: input, shape index: {}]
  %s4 = inlined_call_operand.vmem [shape: f32[1,10], index: 4, kind: input, shape index: {}]
  %s5 = inlined_call_operand.hbm [shape: f32[8,10], index: 5, kind: output, shape index: {}]
  %s6 = sld [smem:[#allocation0]]
  $region30: #{tpu_custom_call.1} parent=0
    _
  %s8 = ssub.s32 1, %s6
  %s9 = scalar_select 0, %s8, %s6
  $region1: #{tpu_custom_call.1} parent=0
    #allocation2 [shape = 'u8[4096]{0}', space=vmem, size = 0x1000, scoped, tag = 'output window, operand 0, single buffered']
    #allocation3 [shape = 's32[1]{0}', space=sflag, size = 0x4, scoped, tag = 'scoped memory for tpu_custom_call.1']
    %10 = vsyncpa [#allocation3], 0
    // Predicated region
    $region2: #{tpu_custom_call.1} parent=1 // pred_check
      _
    $region3: #{tpu_custom_call.1} parent=1 // pred_check_branch
      %12 = sbr.rel (0) target = $region5
    $region4: #{tpu_custom_call.1} parent=1 // pred_region
      _
    $region5: #{tpu_custom_call.1} parent=1 // pred_fallthru
      _
    // Predicated region
    $region6: #{tpu_custom_call.1} parent=1 // pred_check
      _
    $region7: #{tpu_custom_call.1} parent=1 // pred_check_branch
      %14 = sbr.rel (0) target = $region9
    $region8: #{tpu_custom_call.1} parent=1 // pred_region
      _
    $region9: #{tpu_custom_call.1} parent=1 // pred_fallthru
      _
    // Predicated region
    $region10: #{tpu_custom_call.1} parent=1 // pred_check
      _
    $region11: #{tpu_custom_call.1} parent=1 // pred_check_branch
      %16 = sbr.rel (0) target = $region13
    $region12: #{tpu_custom_call.1} parent=1 // pred_region
      _
    $region13: #{tpu_custom_call.1} parent=1 // pred_fallthru
      _
    // Predicated region
    $region14: #{tpu_custom_call.1} parent=1 // pred_check
      _
    $region15: #{tpu_custom_call.1} parent=1 // pred_check_branch
      %18 = sbr.rel (0) target = $region17
    $region16: #{tpu_custom_call.1} parent=1 // pred_region
      _
    $region17: #{tpu_custom_call.1} parent=1 // pred_fallthru
      _
    // Predicated region
    $region18: #{tpu_custom_call.1} parent=1 // pred_check
      _
    $region19: #{tpu_custom_call.1} parent=1 // pred_check_branch
      %20 = sbr.rel (0) target = $region21
    $region20: #{tpu_custom_call.1} parent=1 // pred_region
      _
    $region21: #{tpu_custom_call.1} parent=1 // pred_fallthru
      _
    %v22 = vld [vmem:[%s0] sm:$0xff]
    %v23 = vpack.c.bf16 %v22, %v22
    %v24 = vld [vmem:[%s1] sm:$0xf]
    %v25 = vld [vmem:[%s1 + $0x4] sm:$0xf]
    %v26 = vld [vmem:[%s1 + $0x8] sm:$0xf]
    %v27 = vld [vmem:[%s1 + $0xc] sm:$0xf]
    %v28 = vld [vmem:[%s1 + $0x10] sm:$0xf]
    %v29 = vld [vmem:[%s1 + $0x14] sm:$0xf]
    %v30 = vld [vmem:[%s1 + $0x18] sm:$0xf]
    %v31 = vld [vmem:[%s1 + $0x1c] sm:$0xf]
    %v32 = vld [vmem:[%s2] sm:$0x1]
    %v34 = vperm.slane %v32, 0
    %v44 = vunpack.c.l.b16 %v24
    %v45 = vunpack.c.l.b16 %v25
    %v46 = vunpack.c.l.b16 %v26
    %v47 = vunpack.c.l.b16 %v27
    %v48 = vunpack.c.l.b16 %v28
    %v49 = vunpack.c.l.b16 %v29
    %v50 = vunpack.c.l.b16 %v30
    %v51 = vunpack.c.l.b16 %v31
    %v52 = vpack.c.b16 %v45, %v44
    %v53 = vpack.c.b16 %v47, %v46
    %v54 = vpack.c.b16 %v49, %v48
    %v55 = vpack.c.b16 %v51, %v50
    %vm60 = vcmask 523264
    %v62 = vsel %vm60, %v23, 0
    %64 = vmatpush.bf16.msra.mxu0 0
    %65 = vmatpush.bf16.msra.mxu0 0
    %66 = vmatpush.bf16.msra.mxu0 0
    %67 = vmatpush.bf16.msra.mxu0 0
    %68 = vmatpush.bf16.msra.mxu0 %v55
    %69 = vmatpush.bf16.msra.mxu0 %v54
    %70 = vmatpush.bf16.msra.mxu0 %v53
    %71 = vmatpush.bf16.msra.mxu0 %v52
    %72 = vmatmul.bf16.gmra.mxu0 %v62
    %v73 = vpop.f32.mrf.mxu0
    %v74 = vadd.f32 %v34, %v73
    %v75 = vpop.f32.mrf.mxu0
    %76 = vdwg.mxu0
    %v77 = vmax.f32 %v74, 0.0
    %v78 = vpack.c.bf16 %v77, %v77
    %v79 = vld [vmem:[%s3] sm:$0xf]
    %v80 = vld [vmem:[%s3 + $0x4] sm:$0xf]
    %v81 = vld [vmem:[%s3 + $0x8] sm:$0xf]
    %v82 = vld [vmem:[%s3 + $0xc] sm:$0xf]
    %v83 = vld [vmem:[%s4] sm:$0x1]
    %v85 = vperm.slane %v83, 0
    %v91 = vunpack.c.l.b16 %v79
    %v92 = vunpack.c.l.b16 %v80
    %v93 = vunpack.c.l.b16 %v81
    %v94 = vunpack.c.l.b16 %v82
    %v95 = vpack.c.b16 %v92, %v91
    %v96 = vpack.c.b16 %v94, %v93
    %vm99 = vcmask 261120
    %v101 = vsel %vm99, %v78, 0
    %103 = vmatpush.bf16.msra.mxu0 0
    %104 = vmatpush.bf16.msra.mxu0 0
    %105 = vmatpush.bf16.msra.mxu0 0
    %106 = vmatpush.bf16.msra.mxu0 0
    %107 = vmatpush.bf16.msra.mxu0 0
    %108 = vmatpush.bf16.msra.mxu0 0
    %109 = vmatpush.bf16.msra.mxu0 %v96
    %110 = vmatpush.bf16.msra.mxu0 %v95
    %111 = vmatmul.bf16.gmra.mxu0 %v101
    %v112 = vpop.f32.mrf.mxu0
    %v113 = vadd.f32 %v85, %v112
    %v114 = vpop.f32.mrf.mxu0
    %115 = vdwg.mxu0
    %vm116 = vcmask 80896
    %117 = vst.msk [vmem:[#allocation2] sm:$0xff] %vm116, %v113
    // Predicated region
    $region22: #{tpu_custom_call.1} parent=1 // pred_check
      _
    $region23: #{tpu_custom_call.1} parent=1 // pred_check_branch
      %119 = sbr.rel (0) target = $region25
    $region24: #{tpu_custom_call.1} parent=1 // pred_region
      %121 = vsyncadd [#allocation3], 0
      %s123 = sshll.u32 [#allocation2], 4
      %s124 = int_to_ptr.vmem [resolvable:$true] %s123
      %s125 = sshll.u32 %s5, 4
      %s126 = int_to_ptr.hbm [resolvable:$true] %s125
      %128 = dma.vmem_to_hbm [thread:$0]  %s124, 128, %s126, [#allocation3]
    $region25: #{tpu_custom_call.1} parent=1 // pred_fallthru
      _
    // Predicated region
    $region26: #{tpu_custom_call.1} parent=1 // pred_check
      _
    $region27: #{tpu_custom_call.1} parent=1 // pred_check_branch
      %130 = sbr.rel (0) target = $region29
    $region28: #{tpu_custom_call.1} parent=1 // pred_region
      %132 = dma.done [#allocation3], 128
    $region29: #{tpu_custom_call.1} parent=1 // pred_fallthru
      _
    %133 = vsyncpa [#allocation3], 1

</llo_original>
